<compile_context>
chip_gen: v7x
topology: tpu7x:2x2x1
jax: 0.10.0
libtpu: 0.0.40
codegen_flags: <defaults>
</compile_context>

<pallas_src>
import functools

import jax
import jax.numpy as jnp
from jax.experimental import pallas as pl
from jax.experimental.pallas import tpu as pltpu


def _round_up(v, m):
    return ((v + m - 1) // m) * m


def _cdiv(a, b):
    return -(-a // b)


def _vmem_budget_bytes():
    """Usable VMEM per core, generation aware (v7x: 64 MiB, v5e/v6e: 128 MiB)."""
    try:
        cap = int(pltpu.get_tpu_info().vmem_capacity_bytes)
    except Exception:
        cap = 64 * 1024 * 1024      # conservative fallback, fits every generation
    return int(cap * 0.85)          # headroom for Mosaic-internal scratch


def _quantize_linear_kernel(x_ref, w_ref, g_ref, b_ref, h_ref, o_ref, acc_ref=None):
    """One (bm, bk) activation tile x (N, bk) sign-weight tile step.

    x_ref : (bm, bk)   activations
    w_ref : (N, bk)    sign(W) tile (activation dtype when resident, bf16 when K-tiled)
    g_ref : (1, bk)    f32 input-side scale
    b_ref : (1, N)     f32 bias          (fully VMEM-resident)
    h_ref : (1, N)     f32 output scale  (fully VMEM-resident)
    o_ref : (bm, N)    output tile, resident across the k grid axis
    acc_ref: (bm, N)   f32 scratch, only present when o_ref.dtype != f32
    """
    acc = o_ref if acc_ref is None else acc_ref
    k_idx = pl.program_id(1)

    mxu_dtype = x_ref.dtype
    # Apply g to x in f32 (matches the reference's input-precision x*g).
    xg = (x_ref[...].astype(jnp.float32) * g_ref[...]).astype(mxu_dtype)
    w = w_ref[...].astype(mxu_dtype)                 # bf16 sign -> exact upcast
    contrib = jax.lax.dot_general(                   # x @ sign(W).T, f32 accumulate
        xg, w,
        dimension_numbers=(((1,), (1,)), ((), ())),
        preferred_element_type=jnp.float32)

    @pl.when(k_idx == 0)
    def _():
        acc[...] = contrib.astype(acc.dtype)

    @pl.when(k_idx > 0)
    def _():
        acc[...] += contrib.astype(acc.dtype)

    @pl.when(k_idx == pl.num_programs(1) - 1)
    def _():
        y = (acc[...].astype(jnp.float32) + b_ref[...]) * h_ref[...]
        # LayerNorm over the last dim (eps=1e-5, unit gamma, zero beta),
        # two-pass variance for numerical safety.
        # TODO(synk): the reference's custom `LayerNorm` class body is not
        # shown; standard layer-norm semantics (gamma=1, beta=0) are assumed.
        inv_n = 1.0 / y.shape[-1]
        mean = jnp.sum(y, axis=-1, keepdims=True) * inv_n
        yc = y - mean
        var = jnp.sum(yc * yc, axis=-1, keepdims=True) * inv_n
        o_ref[...] = (yc * jax.lax.rsqrt(var + 1e-5)).astype(o_ref.dtype)


@functools.partial(jax.jit, static_argnames=("block_m", "block_k", "force_k_tiling"))
def quantize_linear_pallas(x, weight, bias, g, h,
                           block_m=512, block_k=512, force_k_tiling=False):
    """x: (..., in_features) -> (..., out_features)."""
    in_features = x.shape[-1]
    out_features = weight.shape[0]
    assert weight.shape == (out_features, in_features)

    lead_shape = x.shape[:-1]
    x2d = x.reshape(-1, in_features)
    m = x2d.shape[0]
    N, K = out_features, in_features

    out_dtype = x.dtype
    need_acc = out_dtype != jnp.float32
    x_it = jnp.dtype(x.dtype).itemsize
    out_it = jnp.dtype(out_dtype).itemsize

    budget = _vmem_budget_bytes()
    vec_bytes = 4 * (K + 2 * N) + 4096          # g + bias + h (+ slack)

    def _bm_for(limit):
        """Padding-minimising row tile size under an upper bound `limit`."""
        tiles = max(1, _cdiv(m, max(limit, 8)))
        return _round_up(_cdiv(m, tiles), 8)

    def _resident_bytes(bm_):
        return (N * K * x_it                     # sign weight, single resident copy
                + 2 * bm_ * K * x_it             # double-buffered x tile
                + 2 * bm_ * N * out_it           # double-buffered output tile
                + (bm_ * N * 4 if need_acc else 0)
                + vec_bytes)

    # ---- choose path / tile sizes (all static Python) ----------------------
    resident, bm = False, None
    if not force_k_tiling:
        for cand in sorted({block_m, 512, 256, 128, 64}, reverse=True):
            if cand > block_m:
                continue
            cand_bm = _bm_for(cand)
            if _resident_bytes(cand_bm) <= budget:
                resident, bm = True, cand_bm
                break

    g_row = g.astype(jnp.float32).reshape(1, K)
    b_row = bias.astype(jnp.float32).reshape(1, N)
    h_row = h.astype(jnp.float32).reshape(1, N)

    if resident:
        # Weight fetched from HBM exactly once, stays resident for all M tiles.
        wq = jnp.sign(weight).astype(x.dtype)
        k_steps = 1
        m_pad = _round_up(m, bm)
        if m_pad != m:
            x2d = jnp.pad(x2d, ((0, m_pad - m), (0, 0)))
        in_specs = [
            pl.BlockSpec((bm, K), lambda i, k: (i, 0)),
            pl.BlockSpec(memory_space=pltpu.MemorySpace.VMEM),   # sign(W), resident
            pl.BlockSpec(memory_space=pltpu.MemorySpace.VMEM),   # g
            pl.BlockSpec(memory_space=pltpu.MemorySpace.VMEM),   # bias
            pl.BlockSpec(memory_space=pltpu.MemorySpace.VMEM),   # h
        ]
    else:
        # K-tiled path: bf16 sign weight (+/-1 exact) halves the HBM re-stream.
        bm = _bm_for(block_m)
        bk = max(128, (min(block_k, _round_up(K, 128)) // 128) * 128)

        def _tiled_bytes(bm_, bk_):
            upcast = N * bk_ * x_it if x_it > 2 else 0   # in-kernel f32 upcast temp
            return (2 * bm_ * bk_ * x_it                 # x tiles
                    + 2 * N * bk_ * 2 + upcast           # bf16 weight tiles
                    + 2 * bm_ * N * out_it               # output tiles
                    + (bm_ * N * 4 if need_acc else 0)
                    + 2 * bk_ * 4 + vec_bytes)

        while _tiled_bytes(bm, bk) > budget and bk > 128:
            bk = max(128, ((bk // 128) // 2) * 128)
        while _tiled_bytes(bm, bk) > budget and bm > 64:
            bm = _round_up(max(bm // 2, 8), 8)
        # TODO(synk): extremely large out_features would additionally need N tiling.

        wq = jnp.sign(weight).astype(jnp.bfloat16)
        k_pad = _round_up(K, bk)
        if k_pad != K:                                   # exact: pads are zeros
            x2d = jnp.pad(x2d, ((0, 0), (0, k_pad - K)))
            wq = jnp.pad(wq, ((0, 0), (0, k_pad - K)))
            g_row = jnp.pad(g_row, ((0, 0), (0, k_pad - K)))
        m_pad = _round_up(m, bm)
        if m_pad != m:
            x2d = jnp.pad(x2d, ((0, m_pad - m), (0, 0)))
        k_steps = k_pad // bk
        in_specs = [
            pl.BlockSpec((bm, bk), lambda i, k: (i, k)),
            pl.BlockSpec((N, bk), lambda i, k: (0, k)),
            pl.BlockSpec((1, bk), lambda i, k: (0, k)),
            pl.BlockSpec(memory_space=pltpu.MemorySpace.VMEM),   # bias
            pl.BlockSpec(memory_space=pltpu.MemorySpace.VMEM),   # h
        ]

    # Separate f32 accumulator only when the output dtype can't hold partials.
    scratch = [pltpu.VMEM((bm, N), jnp.float32)] if need_acc else []

    out = pl.pallas_call(
        _quantize_linear_kernel,
        out_shape=jax.ShapeDtypeStruct((m_pad, N), out_dtype),
        grid_spec=pltpu.PrefetchScalarGridSpec(
            num_scalar_prefetch=0,
            grid=(m_pad // bm, k_steps),
            in_specs=in_specs,
            out_specs=pl.BlockSpec((bm, N), lambda i, k: (i, 0)),
            scratch_shapes=scratch),
        compiler_params=pltpu.CompilerParams(
            dimension_semantics=("parallel", "arbitrary"),
            vmem_limit_bytes=budget),
    )(x2d, wq, g_row, b_row, h_row)

    return out[:m].reshape(*lead_shape, N)


def _reference(x, weight, bias, g, h):
    sign_w = jnp.sign(weight)
    y = (x * g) @ sign_w.T + bias
    y = y * h
    mean = jnp.mean(y, axis=-1, keepdims=True)
    var = jnp.mean((y - mean) ** 2, axis=-1, keepdims=True)
    return (y - mean) * jax.lax.rsqrt(var + 1e-5)


def _make_inputs(key, batch, seq, in_features, out_features):
    k_x, k_w, k_b = jax.random.split(key, 3)
    x = jax.random.normal(k_x, (batch, seq, in_features), dtype=jnp.float32)
    weight = jax.random.normal(k_w, (out_features, in_features), dtype=jnp.float32)
    bias = jax.random.normal(k_b, (out_features,), dtype=jnp.float32) * 0.1
    # g, h come from the rank-1 SVD approximation of the weight (as in __init__).
    U, S, VT = jnp.linalg.svd(weight, full_matrices=False)
    g = VT[0, :]          # (in_features,)
    h = U[:, 0]           # (out_features,)
    return x, weight, bias, g, h


if __name__ == "__main__":
    key = jax.random.PRNGKey(0)
    k1, k2 = jax.random.split(key)

    # Test 1: square weight (LayerNorm dim == out dim), weight-resident path.
    x, w, b, g, h = _make_inputs(k1, batch=2, seq=8, in_features=128, out_features=128)
    out = jax.block_until_ready(quantize_linear_pallas(x, w, b, g, h))
    ref = _reference(x, w, b, g, h)
    assert out.shape == ref.shape
    assert jnp.allclose(out, ref, atol=1e-4, rtol=1e-4)

    # Test 2: non-square, non-128-multiple K, forced K-tiled (bf16 sign) path.
    x2, w2, b2, g2, h2 = _make_inputs(k2, batch=2, seq=8, in_features=200, out_features=128)
    out2 = jax.block_until_ready(
        quantize_linear_pallas(x2, w2, b2, g2, h2, block_k=128, force_k_tiling=True))
    ref2 = _reference(x2, w2, b2, g2, h2)
    assert out2.shape == ref2.shape
    assert jnp.allclose(out2, ref2, atol=1e-4, rtol=1e-4)

    print("KERNEL_OK")
</pallas_src>

<mosaic_0001>
module attributes {stable_mosaic.version = 11 : i64} {
  func.func @_quantize_linear_kernel(%arg0: i32, %arg1: i32, %arg2: memref<16x128xf32, #tpu.memory_space<vmem>>, %arg3: memref<128x128xf32, #tpu.memory_space<vmem>>, %arg4: memref<1x128xf32, #tpu.memory_space<vmem>>, %arg5: memref<1x128xf32, #tpu.memory_space<vmem>>, %arg6: memref<1x128xf32, #tpu.memory_space<vmem>>, %arg7: memref<16x128xf32, #tpu.memory_space<vmem>>) attributes {dimension_semantics = [#tpu.dimension_semantics<parallel>, #tpu.dimension_semantics<arbitrary>], iteration_bounds = array<i64: 1, 1>, scalar_prefetch = 0 : i64, scratch_operands = 0 : i64, tpu.core_type = #tpu.core_type<tc>, window_params = [{transform_indices = @transform_0, window_bounds = array<i64: 16, 128>}, {pipeline_mode = #tpu.pipeline_mode<synchronous>, transform_indices = @transform_1, window_bounds = array<i64: 128, 128>}, {pipeline_mode = #tpu.pipeline_mode<synchronous>, transform_indices = @transform_2, window_bounds = array<i64: 1, 128>}, {pipeline_mode = #tpu.pipeline_mode<synchronous>, transform_indices = @transform_3, window_bounds = array<i64: 1, 128>}, {pipeline_mode = #tpu.pipeline_mode<synchronous>, transform_indices = @transform_4, window_bounds = array<i64: 1, 128>}, {transform_indices = @transform_5, window_bounds = array<i64: 16, 128>}]} {
    %c0 = arith.constant 0 : index
    %c0_0 = arith.constant 0 : index
    %0 = vector.load %arg2[%c0, %c0_0] : memref<16x128xf32, #tpu.memory_space<vmem>>, vector<16x128xf32>
    %c0_1 = arith.constant 0 : index
    %c0_2 = arith.constant 0 : index
    %1 = vector.load %arg4[%c0_1, %c0_2] : memref<1x128xf32, #tpu.memory_space<vmem>>, vector<1x128xf32>
    %2 = vector.broadcast %1 : vector<1x128xf32> to vector<16x128xf32>
    %3 = arith.mulf %0, %2 : vector<16x128xf32>
    %c0_3 = arith.constant 0 : index
    %c0_4 = arith.constant 0 : index
    %4 = vector.load %arg3[%c0_3, %c0_4] : memref<128x128xf32, #tpu.memory_space<vmem>>, vector<128x128xf32>
    %cst = arith.constant dense<0.000000e+00> : vector<16x128xf32>
    %5 = tpu.matmul %3, %4, %cst {dimension_numbers = #tpu.dot_dimension_numbers<[1], [1], [0], [0], [0, 0, 1, 0], [], []>} : vector<16x128xf32>, vector<128x128xf32>, vector<16x128xf32> -> vector<16x128xf32>
    %c0_i32 = arith.constant 0 : i32
    %6 = arith.cmpi eq, %arg1, %c0_i32 : i32
    %7 = arith.extui %6 : i1 to i32
    %c0_i32_5 = arith.constant 0 : i32
    %8 = arith.cmpi ne, %7, %c0_i32_5 : i32
    scf.if %8 {
      %c0_10 = arith.constant 0 : index
      %c0_11 = arith.constant 0 : index
      %15 = vector.load %arg7[%c0_10, %c0_11] : memref<16x128xf32, #tpu.memory_space<vmem>>, vector<16x128xf32>
      tpu.vector_store %arg7[%c0_10, %c0_11], %5 {strides = array<i32>} : memref<16x128xf32, #tpu.memory_space<vmem>>, vector<16x128xf32>,
    } else {
    }
    %c0_i32_6 = arith.constant 0 : i32
    %9 = arith.cmpi sgt, %arg1, %c0_i32_6 : i32
    %10 = arith.extui %9 : i1 to i32
    %c0_i32_7 = arith.constant 0 : i32
    %11 = arith.cmpi ne, %10, %c0_i32_7 : i32
    scf.if %11 {
      %c0_10 = arith.constant 0 : index
      %c0_11 = arith.constant 0 : index
      %15 = vector.load %arg7[%c0_10, %c0_11] : memref<16x128xf32, #tpu.memory_space<vmem>>, vector<16x128xf32>
      %16 = arith.addf %15, %5 : vector<16x128xf32>
      %c0_12 = arith.constant 0 : index
      %c0_13 = arith.constant 0 : index
      %17 = vector.load %arg7[%c0_12, %c0_13] : memref<16x128xf32, #tpu.memory_space<vmem>>, vector<16x128xf32>
      tpu.vector_store %arg7[%c0_12, %c0_13], %16 {strides = array<i32>} : memref<16x128xf32, #tpu.memory_space<vmem>>, vector<16x128xf32>,
    } else {
    }
    %c0_i32_8 = arith.constant 0 : i32
    %12 = arith.cmpi eq, %arg1, %c0_i32_8 : i32
    %13 = arith.extui %12 : i1 to i32
    %c0_i32_9 = arith.constant 0 : i32
    %14 = arith.cmpi ne, %13, %c0_i32_9 : i32
    scf.if %14 {
      %c0_10 = arith.constant 0 : index
      %c0_11 = arith.constant 0 : index
      %15 = vector.load %arg7[%c0_10, %c0_11] : memref<16x128xf32, #tpu.memory_space<vmem>>, vector<16x128xf32>
      %c0_12 = arith.constant 0 : index
      %c0_13 = arith.constant 0 : index
      %16 = vector.load %arg5[%c0_12, %c0_13] : memref<1x128xf32, #tpu.memory_space<vmem>>, vector<1x128xf32>
      %17 = vector.broadcast %16 : vector<1x128xf32> to vector<16x128xf32>
      %18 = arith.addf %15, %17 : vector<16x128xf32>
      %c0_14 = arith.constant 0 : index
      %c0_15 = arith.constant 0 : index
      %19 = vector.load %arg6[%c0_14, %c0_15] : memref<1x128xf32, #tpu.memory_space<vmem>>, vector<1x128xf32>
      %20 = vector.broadcast %19 : vector<1x128xf32> to vector<16x128xf32>
      %21 = arith.mulf %18, %20 : vector<16x128xf32>
      %cst_16 = arith.constant dense<0.000000e+00> : vector<16xf32>
      %22 = vector.multi_reduction <add>, %21, %cst_16 [1] : vector<16x128xf32> to vector<16xf32>
      %23 = vector.shape_cast %22 : vector<16xf32> to vector<16x1xf32>
      %cst_17 = arith.constant 7.812500e-03 : f32
      %24 = vector.broadcast %cst_17 : f32 to vector<16x1xf32>
      %25 = arith.mulf %23, %24 : vector<16x1xf32>
      %26 = vector.broadcast %25 : vector<16x1xf32> to vector<16x128xf32>
      %27 = arith.subf %21, %26 : vector<16x128xf32>
      %28 = arith.mulf %27, %27 : vector<16x128xf32>
      %cst_18 = arith.constant dense<0.000000e+00> : vector<16xf32>
      %29 = vector.multi_reduction <add>, %28, %cst_18 [1] : vector<16x128xf32> to vector<16xf32>
      %30 = vector.shape_cast %29 : vector<16xf32> to vector<16x1xf32>
      %cst_19 = arith.constant 7.812500e-03 : f32
      %31 = vector.broadcast %cst_19 : f32 to vector<16x1xf32>
      %32 = arith.mulf %30, %31 : vector<16x1xf32>
      %cst_20 = arith.constant 9.99999974E-6 : f32
      %33 = vector.broadcast %cst_20 : f32 to vector<16x1xf32>
      %34 = arith.addf %32, %33 : vector<16x1xf32>
      %35 = math.rsqrt %34 : vector<16x1xf32>
      %36 = vector.broadcast %35 : vector<16x1xf32> to vector<16x128xf32>
      %37 = arith.mulf %27, %36 : vector<16x128xf32>
      %c0_21 = arith.constant 0 : index
      %c0_22 = arith.constant 0 : index
      %38 = vector.load %arg7[%c0_21, %c0_22] : memref<16x128xf32, #tpu.memory_space<vmem>>, vector<16x128xf32>
      tpu.vector_store %arg7[%c0_21, %c0_22], %37 {strides = array<i32>} : memref<16x128xf32, #tpu.memory_space<vmem>>, vector<16x128xf32>,
    } else {
    }
    return
  }
  func.func @transform_0(%arg0: i32, %arg1: i32) -> (i32, i32) {
    %c0_i32 = arith.constant 0 : i32
    %c0_i32_0 = arith.constant 0 : i32
    return %arg0, %c0_i32 : i32, i32
  }
  func.func @transform_1(%arg0: i32, %arg1: i32) -> (i32, i32) {
    %c0_i32 = arith.constant 0 : i32
    %c0_i32_0 = arith.constant 0 : i32
    %c0_i32_1 = arith.constant 0 : i32
    return %c0_i32, %c0_i32_0 : i32, i32
  }
  func.func @transform_2(%arg0: i32, %arg1: i32) -> (i32, i32) {
    %c0_i32 = arith.constant 0 : i32
    %c0_i32_0 = arith.constant 0 : i32
    %c0_i32_1 = arith.constant 0 : i32
    return %c0_i32, %c0_i32_0 : i32, i32
  }
  func.func @transform_3(%arg0: i32, %arg1: i32) -> (i32, i32) {
    %c0_i32 = arith.constant 0 : i32
    %c0_i32_0 = arith.constant 0 : i32
    %c0_i32_1 = arith.constant 0 : i32
    return %c0_i32, %c0_i32_0 : i32, i32
  }
  func.func @transform_4(%arg0: i32, %arg1: i32) -> (i32, i32) {
    %c0_i32 = arith.constant 0 : i32
    %c0_i32_0 = arith.constant 0 : i32
    %c0_i32_1 = arith.constant 0 : i32
    return %c0_i32, %c0_i32_0 : i32, i32
  }
  func.func @transform_5(%arg0: i32, %arg1: i32) -> (i32, i32) {
    %c0_i32 = arith.constant 0 : i32
    %c0_i32_0 = arith.constant 0 : i32
    return %arg0, %c0_i32 : i32, i32
  }
}

</mosaic_0001>

<llo_original>
// kernel: quantize_linear_pallas.1
$region0: #{quantize_linear_pallas.1}
  #allocation0 [shape = 'u32[]', space=smem, size = 0x4, offset = 0x4, fixed_abs, tag = 'smem constant byte address 0x4 - core index']
  #allocation1 [shape = 'u32[144,128]{1,0:T(1,128)}', space=vmem, size = 0x12000, scoped, tag = 'internal scratch']
  %s0 = inlined_call_operand.vmem [shape: f32[16,128], index: 0, kind: input, shape index: {}]
  %s1 = inlined_call_operand.vmem [shape: f32[128,128], index: 1, kind: input, shape index: {}]
  %s2 = inlined_call_operand.vmem [shape: f32[1,128], index: 2, kind: input, shape index: {}]
  %s3 = inlined_call_operand.vmem [shape: f32[1,128], index: 3, kind: input, shape index: {}]
  %s4 = inlined_call_operand.vmem [shape: f32[1,128], index: 4, kind: input, shape index: {}]
  %s5 = inlined_call_operand.hbm [shape: f32[16,128], index: 5, kind: output, shape index: {}]
  %s6 = sld [smem:[#allocation0]]
  $region42: #{quantize_linear_pallas.1} parent=0
    _
  %s8 = ssub.s32 1, %s6
  %s9 = scalar_select 0, %s8, %s6
  $region1: #{quantize_linear_pallas.1} parent=0
    #allocation2 [shape = 'u8[8192]{0}', space=vmem, size = 0x2000, scoped, tag = 'output window, operand 0, single buffered']
    #allocation3 [shape = 's32[1]{0}', space=sflag, size = 0x4, scoped, tag = 'scoped memory for quantize_linear_pallas.1']
    %10 = vsyncpa [#allocation3], 0
    // Predicated region
    $region2: #{quantize_linear_pallas.1} parent=1 // pred_check
      _
    $region3: #{quantize_linear_pallas.1} parent=1 // pred_check_branch
      %12 = sbr.rel (0) target = $region5
    $region4: #{quantize_linear_pallas.1} parent=1 // pred_region
      _
    $region5: #{quantize_linear_pallas.1} parent=1 // pred_fallthru
      _
    // Predicated region
    $region6: #{quantize_linear_pallas.1} parent=1 // pred_check
      _
    $region7: #{quantize_linear_pallas.1} parent=1 // pred_check_branch
      %14 = sbr.rel (0) target = $region9
    $region8: #{quantize_linear_pallas.1} parent=1 // pred_region
      _
    $region9: #{quantize_linear_pallas.1} parent=1 // pred_fallthru
      _
    // Predicated region
    $region10: #{quantize_linear_pallas.1} parent=1 // pred_check
      _
    $region11: #{quantize_linear_pallas.1} parent=1 // pred_check_branch
      %16 = sbr.rel (0) target = $region13
    $region12: #{quantize_linear_pallas.1} parent=1 // pred_region
      _
    $region13: #{quantize_linear_pallas.1} parent=1 // pred_fallthru
      _
    // Predicated region
    $region14: #{quantize_linear_pallas.1} parent=1 // pred_check
      _
    $region15: #{quantize_linear_pallas.1} parent=1 // pred_check_branch
      %18 = sbr.rel (0) target = $region17
    $region16: #{quantize_linear_pallas.1} parent=1 // pred_region
      _
    $region17: #{quantize_linear_pallas.1} parent=1 // pred_fallthru
      _
    // Predicated region
    $region18: #{quantize_linear_pallas.1} parent=1 // pred_check
      _
    $region19: #{quantize_linear_pallas.1} parent=1 // pred_check_branch
      %20 = sbr.rel (0) target = $region21
    $region20: #{quantize_linear_pallas.1} parent=1 // pred_region
      _
    $region21: #{quantize_linear_pallas.1} parent=1 // pred_fallthru
      _
    %v21 = vld [vmem:[%s0] sm:$0xff]
    %v22 = vld [vmem:[%s0 + $0x8] sm:$0xff]
    %v23 = vld [vmem:[%s2] sm:$0x1]
    %v25 = vlaneseq
    %v26 = vshrl.u32 %v25, 7
    %v27 = vsub.s32 0, %v26
    %v28 = vrot.slane %v23, %v27
    %v30 = vmul.f32 %v21, %v28
    %v31 = vmul.f32 %v22, %v28
    %v32 = vld [vmem:[%s1] sm:$0xff]
    %v33 = vld [vmem:[%s1 + $0x8] sm:$0xff]
    %v34 = vld [vmem:[%s1 + $0x10] sm:$0xff]
    %v35 = vld [vmem:[%s1 + $0x18] sm:$0xff]
    %v36 = vld [vmem:[%s1 + $0x20] sm:$0xff]
    %v37 = vld [vmem:[%s1 + $0x28] sm:$0xff]
    %v38 = vld [vmem:[%s1 + $0x30] sm:$0xff]
    %v39 = vld [vmem:[%s1 + $0x38] sm:$0xff]
    %v40 = vld [vmem:[%s1 + $0x40] sm:$0xff]
    %v41 = vld [vmem:[%s1 + $0x48] sm:$0xff]
    %v42 = vld [vmem:[%s1 + $0x50] sm:$0xff]
    %v43 = vld [vmem:[%s1 + $0x58] sm:$0xff]
    %v44 = vld [vmem:[%s1 + $0x60] sm:$0xff]
    %v45 = vld [vmem:[%s1 + $0x68] sm:$0xff]
    %v46 = vld [vmem:[%s1 + $0x70] sm:$0xff]
    %v47 = vld [vmem:[%s1 + $0x78] sm:$0xff]
    %48 = vmatprep.subr.mxu0 0.0
    %49 = vmatpush1.xpose.msra.mxu0 %v32
    %50 = vmatprep.subr.mxu0 0.0
    %51 = vmatpush1.xpose.msra.mxu0 %v33
    %52 = vmatprep.subr.mxu0 0.0
    %53 = vmatpush1.xpose.msra.mxu0 %v34
    %54 = vmatprep.subr.mxu0 0.0
    %55 = vmatpush1.xpose.msra.mxu0 %v35
    %56 = vmatprep.subr.mxu0 0.0
    %57 = vmatpush1.xpose.msra.mxu0 %v36
    %58 = vmatprep.subr.mxu0 0.0
    %59 = vmatpush1.xpose.msra.mxu0 %v37
    %60 = vmatprep.subr.mxu0 0.0
    %61 = vmatpush1.xpose.msra.mxu0 %v38
    %62 = vmatprep.subr.mxu0 0.0
    %63 = vmatpush1.xpose.msra.mxu0 %v39
    %64 = vmatprep.subr.mxu0 0.0
    %65 = vmatpush1.xpose.msra.mxu0 %v40
    %66 = vmatprep.subr.mxu0 0.0
    %67 = vmatpush1.xpose.msra.mxu0 %v41
    %68 = vmatprep.subr.mxu0 0.0
    %69 = vmatpush1.xpose.msra.mxu0 %v42
    %70 = vmatprep.subr.mxu0 0.0
    %71 = vmatpush1.xpose.msra.mxu0 %v43
    %72 = vmatprep.subr.mxu0 0.0
    %73 = vmatpush1.xpose.msra.mxu0 %v44
    %74 = vmatprep.subr.mxu0 0.0
    %75 = vmatpush1.xpose.msra.mxu0 %v45
    %76 = vmatprep.subr.mxu0 0.0
    %77 = vmatpush1.xpose.msra.mxu0 %v46
    %78 = vmatprep.subr.mxu0 0.0
    %79 = vmatpush1.xpose.msra.mxu0 %v47
    %80 = vmatprep.subr.mxu0 0.0
    %81 = vmatpush1.xpose.msra.mxu0 0.0
    %82 = vmatprep.subr.mxu0 0.0
    %83 = vmatpush1.xpose.msra.mxu0 0.0
    %84 = vmatprep.subr.mxu0 0.0
    %85 = vmatpush1.xpose.msra.mxu0 0.0
    %86 = vmatprep.subr.mxu0 0.0
    %87 = vmatpush1.xpose.msra.mxu0 0.0
    %88 = vmatprep.subr.mxu0 0.0
    %89 = vmatpush1.xpose.msra.mxu0 0.0
    %90 = vmatprep.subr.mxu0 0.0
    %91 = vmatpush1.xpose.msra.mxu0 0.0
    %92 = vmatprep.subr.mxu0 0.0
    %93 = vmatpush1.xpose.msra.mxu0 0.0
    %94 = vmatprep.subr.mxu0 0.0
    %95 = vmatpush1.xpose.msra.mxu0 0.0
    %96 = vmatprep.subr.mxu0 0.0
    %97 = vmatpush1.xpose.msra.mxu0 0.0
    %98 = vmatprep.subr.mxu0 0.0
    %99 = vmatpush1.xpose.msra.mxu0 0.0
    %100 = vmatprep.subr.mxu0 0.0
    %101 = vmatpush1.xpose.msra.mxu0 0.0
    %102 = vmatprep.subr.mxu0 0.0
    %103 = vmatpush1.xpose.msra.mxu0 0.0
    %104 = vmatprep.subr.mxu0 0.0
    %105 = vmatpush1.xpose.msra.mxu0 0.0
    %106 = vmatprep.subr.mxu0 0.0
    %107 = vmatpush1.xpose.msra.mxu0 0.0
    %108 = vmatprep.subr.mxu0 0.0
    %109 = vmatpush1.xpose.msra.mxu0 0.0
    %110 = vmatprep.subr.mxu0 0.0
    %111 = vmatpush1.xpose.msra.mxu0 0.0
    %112 = vmatprep.mubr.f32.mxu0 0.0
    %113 = vmatmul.mubr.f32.gmra.mrb[0].mxu0 %v30
    %v114 = vpop.f32.mrb[0].mxu0
    %v115 = vadd.f32 0.0, %v114
    %v116 = vpop.f32.mrb[0].mxu0
    %117 = vmatprep.mubr.f32.mxu0 0.0
    %118 = vmatmul.mubr.f32.gmra.mrb[0].mxu0 %v31
    %v119 = vpop.f32.mrb[0].mxu0
    %v120 = vadd.f32 0.0, %v119
    %v121 = vpop.f32.mrb[0].mxu0
    %122 = vdwg.mxu0
    %p123 = scmp.eq.s32.totalorder 0, 0
    // Predicated region
    $region22: #{quantize_linear_pallas.1} parent=1 // pred_check
      %p124 = pneg %p123
    $region23: #{quantize_linear_pallas.1} parent=1 // pred_check_branch
      %126 = sbr.rel (%p124) target = $region25
    $region24: #{quantize_linear_pallas.1} parent=1 // pred_region
      %127 = vst [vmem:[#allocation2] sm:$0xff] %v115
      %128 = vst [vmem:[#allocation2 + $0x8] sm:$0xff] %v120
    $region25: #{quantize_linear_pallas.1} parent=1 // pred_fallthru
      _
    %p129 = scmp.gt.s32.totalorder 0, 0
    // Predicated region
    $region26: #{quantize_linear_pallas.1} parent=1 // pred_check
      %p130 = pneg %p129
    $region27: #{quantize_linear_pallas.1} parent=1 // pred_check_branch
      %132 = sbr.rel (%p130) target = $region29
    $region28: #{quantize_linear_pallas.1} parent=1 // pred_region
      %v133 = vld [vmem:[#allocation2] sm:$0xff]
      %v134 = vld [vmem:[#allocation2 + $0x8] sm:$0xff]
      %v135 = vadd.f32 %v133, %v115
      %v136 = vadd.f32 %v134, %v120
      %137 = vst [vmem:[#allocation2] sm:$0xff] %v135
      %138 = vst [vmem:[#allocation2 + $0x8] sm:$0xff] %v136
    $region29: #{quantize_linear_pallas.1} parent=1 // pred_fallthru
      _
    // Predicated region
    $region30: #{quantize_linear_pallas.1} parent=1 // pred_check
      %p139 = pneg %p123
    $region31: #{quantize_linear_pallas.1} parent=1 // pred_check_branch
      %141 = sbr.rel (%p139) target = $region33
    $region32: #{quantize_linear_pallas.1} parent=1 // pred_region
      %v142 = vld [vmem:[#allocation2] sm:$0xff]
      %v143 = vld [vmem:[#allocation2 + $0x8] sm:$0xff]
      %v144 = vld [vmem:[%s3] sm:$0x1]
      %v146 = vlaneseq
      %v147 = vshrl.u32 %v146, 7
      %v148 = vsub.s32 0, %v147
      %v149 = vrot.slane %v144, %v148
      %v151 = vadd.f32 %v142, %v149
      %v152 = vadd.f32 %v143, %v149
      %v153 = vld [vmem:[%s4] sm:$0x1]
      %v155 = vlaneseq
      %v156 = vshrl.u32 %v155, 7
      %v157 = vsub.s32 0, %v156
      %v158 = vrot.slane %v153, %v157
      %v160 = vmul.f32 %v151, %v158
      %v161 = vmul.f32 %v152, %v158
      %162 = vadd.xlane.f32.xlu0 %v160
      %v163 = vpop.xlane.xlu0 %162
      %164 = vadd.xlane.f32.xlu0 %v161
      %v165 = vpop.xlane.xlu0 %164
      %v166 = vmul.f32 %v163, 0.0078125
      %v167 = vmul.f32 %v165, 0.0078125
      %v168 = vsub.f32 %v160, %v166
      %v169 = vsub.f32 %v161, %v167
      %v170 = vmul.f32 %v168, %v168
      %v171 = vmul.f32 %v169, %v169
      %172 = vadd.xlane.f32.xlu0 %v170
      %v173 = vpop.xlane.xlu0 %172
      %174 = vadd.xlane.f32.xlu0 %v171
      %v175 = vpop.xlane.xlu0 %174
      %v176 = vmul.f32 %v173, 0.0078125
      %v177 = vmul.f32 %v175, 0.0078125
      %v178 = vadd.f32 %v176, 1e-05
      %v179 = vadd.f32 %v177, 1e-05
      %v180 = vrsqrt.pop %v178
      %v181 = vrsqrt.pop %v179
      %v182 = vmul.f32 %v168, %v180
      %v183 = vmul.f32 %v169, %v181
      %184 = vst [vmem:[#allocation2] sm:$0xff] %v182
      %185 = vst [vmem:[#allocation2 + $0x8] sm:$0xff] %v183
    $region33: #{quantize_linear_pallas.1} parent=1 // pred_fallthru
      _
    // Predicated region
    $region34: #{quantize_linear_pallas.1} parent=1 // pred_check
      _
    $region35: #{quantize_linear_pallas.1} parent=1 // pred_check_branch
      %187 = sbr.rel (0) target = $region37
    $region36: #{quantize_linear_pallas.1} parent=1 // pred_region
      %s189 = ssub.s32 256, 256
      %190 = vsyncadd [#allocation3], %s189
      %s191 = sshll.u32 [#allocation2], 4
      %s192 = int_to_ptr.vmem [resolvable:$true] %s191
      %197 = dma.vmem_to_hbm [thread:$0]  %s192, 256, %s5, [#allocation3], 128, 128, 8
    $region37: #{quantize_linear_pallas.1} parent=1 // pred_fallthru
      _
    // Predicated region
    $region38: #{quantize_linear_pallas.1} parent=1 // pred_check
      _
    $region39: #{quantize_linear_pallas.1} parent=1 // pred_check_branch
      %199 = sbr.rel (0) target = $region41
    $region40: #{quantize_linear_pallas.1} parent=1 // pred_region
      %200 = dma.done [#allocation3], 256
    $region41: #{quantize_linear_pallas.1} parent=1 // pred_fallthru
      _
    %201 = vsyncpa [#allocation3], 1

</llo_original>
